<compile_context>
chip_gen: v7x
topology: tpu7x:2x2x1
jax: 0.10.0
libtpu: 0.0.40
codegen_flags: <defaults>
</compile_context>

<pallas_src>
import jax
import jax.numpy as jnp
from jax.experimental import pallas as pl
from jax.experimental.pallas import tpu as pltpu


_VMEM_LIMIT_BYTES = 32 << 20   # > v5e's 16 MiB default, <= v7x's 64 MiB physical
_TILE_BUDGET_BYTES = 20 << 20  # double-buffered in+out tile footprint target


def _round_up(x: int, m: int) -> int:
    return (x + m - 1) // m * m


def _choose_tile_rows(n: int, c: int, in_itemsize: int) -> int:
    """Row tile sized by bytes so double-buffered tiles fit the VMEM limit.

    Footprint per row (2 pipeline buffers each):
      logits in (c_lanes * in_itemsize) + probs out (c_lanes * 4)
      + target (128 lanes * 4) + correct (128 lanes * 4)      [lane padding]
    """
    c_lanes = _round_up(c, 128)
    per_row = 2 * (c_lanes * in_itemsize + c_lanes * 4 + 128 * 4 + 128 * 4)
    tm = _TILE_BUDGET_BYTES // per_row
    tm = max(8, min(4096, (tm // 8) * 8))

    # Ensure >= 2 row tiles whenever the batch allows it (v7x dual TensorCore).
    two_tile_cap = _round_up(max(1, (n + 1) // 2), 8)
    tm = min(tm, max(8, two_tile_cap))

    if n < 8:
        tm = n          # block == full (tiny) batch extent, still legal
    elif n <= tm:
        tm = _round_up(n, 8)
    return tm


def softmax_top1_kernel(logits_ref, target_ref, probs_ref, correct_ref):
    """Fused row-softmax + per-row top-1 correctness flags.

    logits_ref  : [TM, C] input dtype (VMEM)
    target_ref  : [TM, 1] int32       (VMEM)
    probs_ref   : [TM, C] float32     (VMEM)  -- softmax(output, dim=1)
    correct_ref : [TM, 1] float32     (VMEM)  -- 1.0 where argmax == target
    """
    x = logits_ref[...].astype(jnp.float32)
    tm, c = x.shape

    # Numerically-stable softmax along the class (lane) axis.
    m = jnp.max(x, axis=1, keepdims=True)
    e = jnp.exp(x - m)
    denom = jnp.sum(e, axis=1, keepdims=True)
    probs_ref[...] = e * pl.reciprocal(denom, approx=False)

    # Top-1 prediction from raw logits; ties -> first occurrence
    # (matches torch.topk ordering for k=1).
    col = jax.lax.broadcasted_iota(jnp.int32, (tm, c), 1)
    idx = jnp.where(x == m, col, jnp.int32(c))
    pred = jnp.min(idx, axis=1, keepdims=True)                  # [TM, 1]

    correct_ref[...] = (pred == target_ref[...]).astype(jnp.float32)


@jax.jit
def calculate_accuracy(logits, target):
    """JAX wrapper mirroring ARCH.calculate_accuracy (topk=(1,)).

    Returns (softmax(logits, axis=1) as float32, top-1 accuracy in percent).
    """
    n, c = logits.shape
    tm = _choose_tile_rows(n, c, jnp.dtype(logits.dtype).itemsize)
    grid = (pl.cdiv(n, tm),)

    # Cheap (n,)->(n,1) int32 view for lane-aligned per-row targets.
    t = target.astype(jnp.int32).reshape(n, 1)

    probs, correct = pl.pallas_call(
        softmax_top1_kernel,
        grid=grid,
        in_specs=[
            pl.BlockSpec((tm, c), lambda i: (i, 0)),
            pl.BlockSpec((tm, 1), lambda i: (i, 0)),
        ],
        out_specs=(
            pl.BlockSpec((tm, c), lambda i: (i, 0)),
            pl.BlockSpec((tm, 1), lambda i: (i, 0)),
        ),
        out_shape=(
            jax.ShapeDtypeStruct((n, c), jnp.float32),
            jax.ShapeDtypeStruct((n, 1), jnp.float32),
        ),
        compiler_params=pltpu.CompilerParams(
            dimension_semantics=("parallel",),
            vmem_limit_bytes=_VMEM_LIMIT_BYTES,
        ),
    )(logits, t)

    # Boundary-tile rows >= n never exist in the (n,1) output (masked stores),
    # so a plain sum over `correct` is exact. Tiny O(n) XLA reduction.
    prec1 = jnp.sum(correct) * (100.0 / n)
    return probs, prec1


class ARCHAccuracy:
    """Tiny stand-in for the ARCH bookkeeping around calculate_accuracy.

    best_prec1 is kept as a device value (no host-blocking float()).
    """

    def __init__(self):
        self.best_prec1 = jnp.float32(0.0)

    def calculate_accuracy(self, output, target):
        probs, prec1 = calculate_accuracy(output, target)
        self.best_prec1 = jnp.maximum(prec1, self.best_prec1)
        return probs, prec1


if __name__ == "__main__":
    # Small deterministic inputs: batch N=10 "episodes" (non-divisible grid,
    # exercises boundary-tile masking), C=32 classes.
    key = jax.random.PRNGKey(0)
    k_logits, k_target = jax.random.split(key)
    N, C = 10, 32
    logits = jax.random.normal(k_logits, (N, C), dtype=jnp.float32)
    target = jax.random.randint(k_target, (N,), 0, C, dtype=jnp.int32)

    arch = ARCHAccuracy()
    probs, prec1 = arch.calculate_accuracy(logits, target)
    probs = jax.block_until_ready(probs)
    prec1 = jax.block_until_ready(prec1)

    # Reference check against plain JAX.
    ref_probs = jax.nn.softmax(logits, axis=1)
    ref_pred = jnp.argmax(ref_probs, axis=1)
    ref_acc = float(jnp.mean((ref_pred == target).astype(jnp.float32)) * 100.0)

    assert probs.shape == (N, C)
    assert jnp.allclose(probs, ref_probs, atol=1e-5, rtol=1e-5), "softmax mismatch"
    assert abs(float(prec1) - ref_acc) < 1e-4, f"accuracy mismatch {float(prec1)} vs {ref_acc}"
    assert float(arch.best_prec1) == float(prec1)

    print("KERNEL_OK")
</pallas_src>

<mosaic_0001>
module attributes {stable_mosaic.version = 11 : i64} {
  func.func @softmax_top1_kernel(%arg0: i32, %arg1: memref<8x32xf32, #tpu.memory_space<vmem>>, %arg2: memref<8x1xi32, #tpu.memory_space<vmem>>, %arg3: memref<8x32xf32, #tpu.memory_space<vmem>>, %arg4: memref<8x1xf32, #tpu.memory_space<vmem>>) attributes {dimension_semantics = [#tpu.dimension_semantics<parallel>], iteration_bounds = array<i64: 2>, scalar_prefetch = 0 : i64, scratch_operands = 0 : i64, tpu.core_type = #tpu.core_type<tc>, window_params = [{transform_indices = @transform_0, window_bounds = array<i64: 8, 32>}, {transform_indices = @transform_1, window_bounds = array<i64: 8, 1>}, {transform_indices = @transform_2, window_bounds = array<i64: 8, 32>}, {transform_indices = @transform_3, window_bounds = array<i64: 8, 1>}]} {
    %c0 = arith.constant 0 : index
    %c0_0 = arith.constant 0 : index
    %0 = vector.load %arg1[%c0, %c0_0] : memref<8x32xf32, #tpu.memory_space<vmem>>, vector<8x32xf32>
    %cst = arith.constant dense<0xFF800000> : vector<8xf32>
    %1 = vector.multi_reduction <maximumf>, %0, %cst [1] : vector<8x32xf32> to vector<8xf32>
    %2 = vector.shape_cast %1 : vector<8xf32> to vector<8x1xf32>
    %3 = vector.broadcast %2 : vector<8x1xf32> to vector<8x32xf32>
    %4 = arith.subf %0, %3 : vector<8x32xf32>
    %5 = math.exp %4 : vector<8x32xf32>
    %cst_1 = arith.constant dense<0.000000e+00> : vector<8xf32>
    %6 = vector.multi_reduction <add>, %5, %cst_1 [1] : vector<8x32xf32> to vector<8xf32>
    %7 = vector.shape_cast %6 : vector<8xf32> to vector<8x1xf32>
    %8 = tpu.reciprocal %7 : vector<8x1xf32> -> vector<8x1xf32>
    %9 = vector.broadcast %8 : vector<8x1xf32> to vector<8x32xf32>
    %10 = arith.mulf %5, %9 : vector<8x32xf32>
    %c0_2 = arith.constant 0 : index
    %c0_3 = arith.constant 0 : index
    %11 = vector.load %arg3[%c0_2, %c0_3] : memref<8x32xf32, #tpu.memory_space<vmem>>, vector<8x32xf32>
    tpu.vector_store %arg3[%c0_2, %c0_3], %10 {strides = array<i32>} : memref<8x32xf32, #tpu.memory_space<vmem>>, vector<8x32xf32>,
    %12 = tpu.iota {dimensions = array<i32: 1>} : vector<8x32xi32>
    %13 = vector.broadcast %2 : vector<8x1xf32> to vector<8x32xf32>
    %14 = arith.cmpf oeq, %0, %13 : vector<8x32xf32>
    %c32_i32 = arith.constant 32 : i32
    %15 = vector.broadcast %c32_i32 : i32 to vector<8x32xi32>
    %16 = arith.select %14, %12, %15 : vector<8x32xi1>, vector<8x32xi32>
    %cst_4 = arith.constant dense<2147483647> : vector<8xi32>
    %17 = vector.multi_reduction <minsi>, %16, %cst_4 [1] : vector<8x32xi32> to vector<8xi32>
    %18 = vector.shape_cast %17 : vector<8xi32> to vector<8x1xi32>
    %c0_5 = arith.constant 0 : index
    %c0_6 = arith.constant 0 : index
    %19 = vector.load %arg2[%c0_5, %c0_6] : memref<8x1xi32, #tpu.memory_space<vmem>>, vector<8x1xi32>
    %20 = arith.cmpi eq, %18, %19 : vector<8x1xi32>
    %21 = arith.extui %20 : vector<8x1xi1> to vector<8x1xi32>
    %22 = arith.sitofp %21 : vector<8x1xi32> to vector<8x1xf32>
    %c0_7 = arith.constant 0 : index
    %c0_8 = arith.constant 0 : index
    %23 = vector.load %arg4[%c0_7, %c0_8] : memref<8x1xf32, #tpu.memory_space<vmem>>, vector<8x1xf32>
    tpu.vector_store %arg4[%c0_7, %c0_8], %22 {strides = array<i32>} : memref<8x1xf32, #tpu.memory_space<vmem>>, vector<8x1xf32>,
    return
  }
  func.func @transform_0(%arg0: i32) -> (i32, i32) {
    %c0_i32 = arith.constant 0 : i32
    %c0_i32_0 = arith.constant 0 : i32
    return %arg0, %c0_i32 : i32, i32
  }
  func.func @transform_1(%arg0: i32) -> (i32, i32) {
    %c0_i32 = arith.constant 0 : i32
    %c0_i32_0 = arith.constant 0 : i32
    return %arg0, %c0_i32 : i32, i32
  }
  func.func @transform_2(%arg0: i32) -> (i32, i32) {
    %c0_i32 = arith.constant 0 : i32
    %c0_i32_0 = arith.constant 0 : i32
    return %arg0, %c0_i32 : i32, i32
  }
  func.func @transform_3(%arg0: i32) -> (i32, i32) {
    %c0_i32 = arith.constant 0 : i32
    %c0_i32_0 = arith.constant 0 : i32
    return %arg0, %c0_i32 : i32, i32
  }
}

</mosaic_0001>

<llo_original>
// kernel: calculate_accuracy.1
$region0: #{calculate_accuracy.1}
  #allocation0 [shape = 'u32[]', space=smem, size = 0x4, offset = 0x4, fixed_abs, tag = 'smem constant byte address 0x4 - core index']
  #allocation1 [shape = 'u32[144,128]{1,0:T(1,128)}', space=vmem, size = 0x12000, scoped, tag = 'internal scratch']
  %s0 = inlined_call_operand.vmem [shape: f32[10,32], index: 0, kind: input, shape index: {}]
  %s1 = inlined_call_operand.vmem [shape: s32[10,1], index: 1, kind: input, shape index: {}]
  %s2 = inlined_call_operand.hbm [shape: f32[10,32], index: 2, kind: output, shape index: {0}]
  %s3 = inlined_call_operand.vmem [shape: f32[10,1], index: 3, kind: output, shape index: {1}]
  %4 = xla_tuple %s2, %s3
  %s5 = sld [smem:[#allocation0]]
  $region49: #{calculate_accuracy.1} parent=0
    _
  %s7 = ssub.s32 1, %s5
  %s8 = scalar_select 0, %s7, %s5
  $region1: #{calculate_accuracy.1} parent=0
    #allocation2 [shape = 'u8[8192]{0}', space=vmem, size = 0x2000, scoped, tag = 'output window, operand 0']
    #allocation3 [shape = 's32[2]{0}', space=sflag, size = 0x8, scoped, tag = 'scoped memory for calculate_accuracy.1']
    %9 = vsyncpa [#allocation3], 0
    %s10 = scalar_lea.sflag [#allocation3], 1
    %11 = vsyncpa %s10, 0
    loop: start=0, step=1, limit=4
    $region2: #{calculate_accuracy.1} parent=1 // loop_pre_header
      _
    $region3: #{calculate_accuracy.1} parent=1 // loop_header
      %s13 = sphi 0, %s17
      %p14 = scmp.ge.s32.totalorder %s13, 4
      %s23 = sphi 0, %s25
      %s26 = sphi 0, %s23
      %s27 = sphi 0, %s26
      %s43 = sphi 0, %s27
      %s49 = sphi 0, %s51
      %s52 = sphi 0, %s49
      %s53 = sphi 0, %s52
      %s69 = sphi 0, %s53
      %s75 = sphi 0, %s77
      %s78 = sphi 0, %s75
      %s79 = sphi 0, %s78
      %s95 = sphi 0, %s79
      %s101 = sphi 0, %s103
      %s104 = sphi 0, %s101
      %s105 = sphi 0, %s104
      %s121 = sphi 0, %s105
    $region4: #{calculate_accuracy.1} parent=1 // loop_header_branch
      %16 = sbr.rel (%p14) target = $region8
    $region5: #{calculate_accuracy.1} parent=1 // loop_body
      %s18 = ssub.s32 %s13, 1
      %s19 = ssub.s32 %s13, 2
      %s20 = sadd.s32 %s13, 1
      %s21 = ssub.s32 %s13, %s20
      %p22 = scmp.eq.s32.totalorder %s21, 0
      %s24 = sadd.s32 %s23, 1
      %s25 = scalar_select %p22, %s23, %s24
      %p28 = pneg %p22
      %p29 = scmp.eq.s32.totalorder %s13, 1
      %p30 = por %p28, %p29
      %p31 = scmp.ne.s32.totalorder %s23, %s26
      %p32 = scmp.eq.s32.totalorder %s13, 0
      %p33 = por %p31, %p32
      %p34 = scmp.ne.s32.totalorder %s23, %s26
      %p35 = scmp.eq.s32.totalorder %s18, 1
      %p36 = por %p34, %p35
      %p37 = scmp.ne.s32.totalorder %s26, %s27
      %p38 = scmp.eq.s32.totalorder %s18, 0
      %p39 = por %p37, %p38
      %p40 = scmp.ne.s32.totalorder %s26, %s27
      %p41 = scmp.eq.s32.totalorder %s19, 1
      %p42 = por %p40, %p41
      %p44 = scmp.ne.s32.totalorder %s27, %s43
      %p45 = scmp.eq.s32.totalorder %s19, 0
      %p46 = por %p44, %p45
      %s47 = ssub.s32 %s13, %s20
      %p48 = scmp.eq.s32.totalorder %s47, 0
      %s50 = sadd.s32 %s49, 1
      %s51 = scalar_select %p48, %s49, %s50
      %p54 = pneg %p48
      %p55 = scmp.eq.s32.totalorder %s13, 1
      %p56 = por %p54, %p55
      %p57 = scmp.ne.s32.totalorder %s49, %s52
      %p58 = scmp.eq.s32.totalorder %s13, 0
      %p59 = por %p57, %p58
      %p60 = scmp.ne.s32.totalorder %s49, %s52
      %p61 = scmp.eq.s32.totalorder %s18, 1
      %p62 = por %p60, %p61
      %p63 = scmp.ne.s32.totalorder %s52, %s53
      %p64 = scmp.eq.s32.totalorder %s18, 0
      %p65 = por %p63, %p64
      %p66 = scmp.ne.s32.totalorder %s52, %s53
      %p67 = scmp.eq.s32.totalorder %s19, 1
      %p68 = por %p66, %p67
      %p70 = scmp.ne.s32.totalorder %s53, %s69
      %p71 = scmp.eq.s32.totalorder %s19, 0
      %p72 = por %p70, %p71
      %s73 = ssub.s32 %s13, %s20
      %p74 = scmp.eq.s32.totalorder %s73, 0
      %s76 = sadd.s32 %s75, 1
      %s77 = scalar_select %p74, %s75, %s76
      %p80 = pneg %p74
      %p81 = scmp.eq.s32.totalorder %s13, 1
      %p82 = por %p80, %p81
      %p83 = scmp.ne.s32.totalorder %s75, %s78
      %p84 = scmp.eq.s32.totalorder %s13, 0
      %p85 = por %p83, %p84
      %p86 = scmp.ne.s32.totalorder %s75, %s78
      %p87 = scmp.eq.s32.totalorder %s18, 1
      %p88 = por %p86, %p87
      %p89 = scmp.ne.s32.totalorder %s78, %s79
      %p90 = scmp.eq.s32.totalorder %s18, 0
      %p91 = por %p89, %p90
      %p92 = scmp.ne.s32.totalorder %s78, %s79
      %p93 = scmp.eq.s32.totalorder %s19, 1
      %p94 = por %p92, %p93
      %p96 = scmp.ne.s32.totalorder %s79, %s95
      %p97 = scmp.eq.s32.totalorder %s19, 0
      %p98 = por %p96, %p97
      %s99 = ssub.s32 %s13, %s20
      %p100 = scmp.eq.s32.totalorder %s99, 0
      %s102 = sadd.s32 %s101, 1
      %s103 = scalar_select %p100, %s101, %s102
      %p106 = pneg %p100
      %p107 = scmp.eq.s32.totalorder %s13, 1
      %p108 = por %p106, %p107
      %p109 = scmp.ne.s32.totalorder %s101, %s104
      %p110 = scmp.eq.s32.totalorder %s13, 0
      %p111 = por %p109, %p110
      %p112 = scmp.ne.s32.totalorder %s101, %s104
      %p113 = scmp.eq.s32.totalorder %s18, 1
      %p114 = por %p112, %p113
      %p115 = scmp.ne.s32.totalorder %s104, %s105
      %p116 = scmp.eq.s32.totalorder %s18, 0
      %p117 = por %p115, %p116
      %p118 = scmp.ne.s32.totalorder %s104, %s105
      %p119 = scmp.eq.s32.totalorder %s19, 1
      %p120 = por %p118, %p119
      %p122 = scmp.ne.s32.totalorder %s105, %s121
      %p123 = scmp.eq.s32.totalorder %s19, 0
      %p124 = por %p122, %p123
      %p125 = scmp.le.s32.totalorder 1, %s13
      %p126 = scmp.lt.s32.totalorder %s13, 3
      %p127 = pnand %p125, %p126
      %p128 = pneg %p127
      // Predicated region
      $region9: #{calculate_accuracy.1} parent=5 // pred_check
        _
      $region10: #{calculate_accuracy.1} parent=5 // pred_check_branch
        %130 = sbr.rel (%p127) target = $region12
      $region11: #{calculate_accuracy.1} parent=5 // pred_region
        %s131 = ssub.s32 %s13, 1
      $region12: #{calculate_accuracy.1} parent=5 // pred_fallthru
        _
      %p132 = scmp.lt.s32.totalorder %s13, 2
      // Predicated region
      $region13: #{calculate_accuracy.1} parent=5 // pred_check
        %p133 = pneg %p132
      $region14: #{calculate_accuracy.1} parent=5 // pred_check_branch
        %135 = sbr.rel (%p133) target = $region16
      $region15: #{calculate_accuracy.1} parent=5 // pred_region
        // Predicated region
        $region17: #{calculate_accuracy.1} parent=15 // pred_check
          %p136 = pneg %p33
        $region18: #{calculate_accuracy.1} parent=15 // pred_check_branch
          %138 = sbr.rel (%p136) target = $region20
        $region19: #{calculate_accuracy.1} parent=15 // pred_region
          %p139 = scmp.lt.s32.totalorder %s13, 1
          %s140 = scalar_select %p139, %s13, 1
          %s141 = smul.addr %s140, 8
          %s142 = scalar_lea.vmem %s0, %s141
        $region20: #{calculate_accuracy.1} parent=15 // pred_fallthru
          _
        // Predicated region
        $region21: #{calculate_accuracy.1} parent=15 // pred_check
          %p143 = pneg %p59
        $region22: #{calculate_accuracy.1} parent=15 // pred_check_branch
          %145 = sbr.rel (%p143) target = $region24
        $region23: #{calculate_accuracy.1} parent=15 // pred_region
          %p146 = scmp.lt.s32.totalorder %s13, 1
          %s147 = scalar_select %p146, %s13, 1
          %s148 = smul.addr %s147, 8
          %s149 = scalar_lea.vmem %s1, %s148
        $region24: #{calculate_accuracy.1} parent=15 // pred_fallthru
          _
      $region16: #{calculate_accuracy.1} parent=5 // pred_fallthru
        _
      %p150 = scmp.le.s32.totalorder 1, %s13
      %p151 = scmp.lt.s32.totalorder %s13, 3
      %p152 = pnand %p150, %p151
      %p153 = pneg %p152
      // Predicated region
      $region25: #{calculate_accuracy.1} parent=5 // pred_check
        _
      $region26: #{calculate_accuracy.1} parent=5 // pred_check_branch
        %155 = sbr.rel (%p152) target = $region28
      $region27: #{calculate_accuracy.1} parent=5 // pred_region
        %s156 = ssub.s32 %s13, 1
        %p157 = scmp.lt.s32.totalorder %s18, 1
        %s158 = scalar_select %p157, %s18, 1
        %s159 = smul.addr %s158, 8
        %s160 = scalar_lea.vmem %s0, %s159
        %p161 = pneg %p39
        %p162 = pneg %p36
        %p163 = scmp.lt.s32.totalorder %s18, 1
        %s164 = scalar_select %p163, %s18, 1
        %s165 = smul.addr %s164, 8
        %s166 = scalar_lea.vmem %s1, %s165
        %p167 = pneg %p65
        %p168 = pneg %p62
        %p169 = pneg %p91
        %p170 = pneg %p88
        %s171 = sand.u32 %s78, 1
        %s172 = scalar_lea.sflag [#allocation3], %s171
        %s173 = sand.u32 %s78, 1
        %s174 = smul.addr %s173, 8
        %s175 = scalar_lea.vmem [#allocation2], %s174
        %p176 = pneg %p117
        %p177 = pneg %p114
        %p178 = scmp.lt.s32.totalorder %s18, 1
        %s179 = scalar_select %p178, %s18, 1
        %s180 = smul.addr %s179, 8
        %s181 = scalar_lea.vmem %s3, %s180
        %p182 = scmp.lt.s32.totalorder %s18, 1
        %s183 = scalar_select %p182, %s18, 1
        %s184 = smul.addr %s183, 8
        %s185 = scalar_lea.vmem %s0, %s184
        %p186 = scmp.lt.s32.totalorder %s18, 1
        %s187 = scalar_select %p186, %s18, 1
        %s188 = smul.addr %s187, 8
        %s189 = scalar_lea.vmem %s1, %s188
        %p190 = scmp.lt.s32.totalorder %s18, 1
        %s191 = scalar_select %p190, %s18, 1
        %s192 = smul.addr %s191, 8
        %s193 = scalar_lea.vmem %s3, %s192
        %v194 = vld [vmem:[%s185] sm:$0xff]
        %vm195 = vcmask 261120
        %v196 = vsel %vm195, %v194, -inf
        %197 = vmax.xlane.f32.xlu0 %v196
        %v198 = vpop.xlane.xlu0 %197
        %v199 = vsub.f32 %v194, %v198
        %v200 = vmul.f32 %v199, 1.442695
        %v201 = vpow.pop %v200
        %v202 = vsel %vm195, %v201, 0.0
        %203 = vadd.xlane.f32.xlu0 %v202
        %v204 = vpop.xlane.xlu0 %203
        %v205 = vrcp.pop %v204
        %v206 = vmul.f32 %v201, %v205
        %207 = vst.msk [vmem:[%s175] sm:$0xff] %vm195, %v206
        %v208 = vlaneseq
        %v209 = vand.u32 %v208, 127
        %vm210 = vcmp.eq.f32.partialorder %v194, %v198
        %v211 = vsel %vm210, %v209, 32
        %v212 = vsel %vm195, %v211, 2147483647
        %v213 = vand.u32 %v212, 65535
        %v214 = vshra.s32 %v212, 16
        %v215 = vcvt.s32.f32 %v213
        %v216 = vcvt.s32.f32 %v214
        %217 = vmin.xlane.f32.xlu0 %v216
        %v218 = vpop.xlane.xlu0 %217
        %vm219 = vcmp.eq.f32.partialorder %v216, %v218
        %v220 = vsel %vm219, %v215, inf
        %221 = vmin.xlane.f32.xlu0 %v220
        %v222 = vpop.xlane.xlu0 %221
        %v223 = vcvt.f32.s32 %v222
        %v224 = vcvt.f32.s32 %v218
        %v225 = vshll.u32 %v224, 16
        %v226 = vadd.s32 %v225, %v223
        %v227 = vld [vmem:[%s189] sm:$0xff]
        %vm228 = vcmp.eq.s32.totalorder %v226, %v227
        %v229 = vsel %vm228, 1, 0
        %v230 = vcvt.s32.f32 %v229
        %vm231 = vcmask 7168
        %232 = vst.msk [vmem:[%s193] sm:$0xff] %vm231, %v230
        %s233 = sand.u32 %s78, 1
        %s234 = scalar_lea.sflag [#allocation3], %s233
        %s235 = sand.u32 %s78, 1
        %s236 = smul.addr %s235, 8
        %s237 = scalar_lea.vmem [#allocation2], %s236
        %p238 = scmp.lt.s32.totalorder %s18, 1
        %s239 = scalar_select %p238, %s18, 1
        %s240 = smul.addr %s239, 8
        %s241 = scalar_lea.vmem %s3, %s240
        // Predicated region
        $region29: #{calculate_accuracy.1} parent=27 // pred_check
          %p242 = pneg %p88
        $region30: #{calculate_accuracy.1} parent=27 // pred_check_branch
          %244 = sbr.rel (%p242) target = $region32
        $region31: #{calculate_accuracy.1} parent=27 // pred_region
          %s246 = ssub.s32 128, 128
          %247 = vsyncadd %s234, %s246
          %s248 = smul.addr %s18, 128
          %s249 = scalar_lea.hbm %s2, %s248
          %s251 = sshll.u32 %s237, 4
          %s252 = int_to_ptr.vmem [resolvable:$true] %s251
          %254 = dma.vmem_to_hbm [thread:$0]  %s252, 128, %s249, %s234
        $region32: #{calculate_accuracy.1} parent=27 // pred_fallthru
          _
        // Predicated region
        $region33: #{calculate_accuracy.1} parent=27 // pred_check
          %p255 = pneg %p114
        $region34: #{calculate_accuracy.1} parent=27 // pred_check_branch
          %257 = sbr.rel (%p255) target = $region36
        $region35: #{calculate_accuracy.1} parent=27 // pred_region
          _
        $region36: #{calculate_accuracy.1} parent=27 // pred_fallthru
          _
      $region28: #{calculate_accuracy.1} parent=5 // pred_fallthru
        _
      %p258 = scmp.le.s32.totalorder 2, %s13
      // Predicated region
      $region37: #{calculate_accuracy.1} parent=5 // pred_check
        %p259 = pneg %p258
      $region38: #{calculate_accuracy.1} parent=5 // pred_check_branch
        %261 = sbr.rel (%p259) target = $region40
      $region39: #{calculate_accuracy.1} parent=5 // pred_region
        %s262 = ssub.s32 %s13, 2
        // Predicated region
        $region41: #{calculate_accuracy.1} parent=39 // pred_check
          %p263 = pneg %p94
        $region42: #{calculate_accuracy.1} parent=39 // pred_check_branch
          %265 = sbr.rel (%p263) target = $region44
        $region43: #{calculate_accuracy.1} parent=39 // pred_region
          %s266 = sand.u32 %s79, 1
          %s267 = scalar_lea.sflag [#allocation3], %s266
          %s268 = sand.u32 %s79, 1
          %s269 = smul.addr %s268, 8
          %s270 = scalar_lea.vmem [#allocation2], %s269
          %271 = dma.done %s267, 128
        $region44: #{calculate_accuracy.1} parent=39 // pred_fallthru
          _
        // Predicated region
        $region45: #{calculate_accuracy.1} parent=39 // pred_check
          %p272 = pneg %p120
        $region46: #{calculate_accuracy.1} parent=39 // pred_check_branch
          %274 = sbr.rel (%p272) target = $region48
        $region47: #{calculate_accuracy.1} parent=39 // pred_region
          %p275 = scmp.lt.s32.totalorder %s19, 1
          %s276 = scalar_select %p275, %s19, 1
          %s277 = smul.addr %s276, 8
          %s278 = scalar_lea.vmem %s3, %s277
        $region48: #{calculate_accuracy.1} parent=39 // pred_fallthru
          _
      $region40: #{calculate_accuracy.1} parent=5 // pred_fallthru
        _
    $region6: #{calculate_accuracy.1} parent=1 // loop_footer
      %s17 = sadd.s32 1, %s13
    $region7: #{calculate_accuracy.1} parent=1 // loop_footer_branch
      %12 = sbr.rel target = $region3
    $region8: #{calculate_accuracy.1} parent=1 // loop_exit
      _
    %279 = vsyncpa [#allocation3], 1
    %s280 = scalar_lea.sflag [#allocation3], 1
    %281 = vsyncpa %s280, 1

</llo_original>
